<compile_context>
chip_gen: v7x
topology: tpu7x:2x2x1
jax: 0.10.0
libtpu: 0.0.40
codegen_flags: <defaults>
</compile_context>

<pallas_src>
import jax
import jax.numpy as jnp
from jax.experimental import pallas as pl
from jax.experimental.pallas import tpu as pltpu

_L = 720
_RS = 2                       # robot-state dims (as in the arena repo)
IN_DIM = _L + _RS             # 722
HIDDEN = 64
FEATURE_DIM = 64
PI_DIM = 32
VF_DIM = 32

# Lane-dense padded dims (output-side only; the 722 contraction dim stays raw).
HID_PAD = 128                 # 64  -> 128
HEAD_PAD = 128                # pi(32) | vf(32) | 64 zero lanes


def _cdiv(a, b):
    return (a + b - 1) // b


def _round_up(x, m):
    return ((x + m - 1) // m) * m


def _tpu_defaults():
    """(batch_tile, vmem_limit_bytes) per TPU generation; conservative fallback."""
    try:
        kind = jax.devices()[0].device_kind.lower()
    except Exception:
        kind = ""
    if "v7" in kind or "tpu7" in kind or "v6" in kind:
        return 2048, 48 * 1024 * 1024     # big tile; ~20 MiB live, well within limit
    if "v5" in kind:
        return 1024, 32 * 1024 * 1024     # v5e scoped default is only 16 MiB
    return 512, None                      # unknown / older gens: stay small


def _choose_tb(batch, tb_target):
    """Balanced batch tile: multiple of 8 (or == B for a single block)."""
    if batch <= tb_target:
        return batch                      # single block; full-dim block is legal
    n_steps = _cdiv(batch, tb_target)
    return _round_up(_cdiv(batch, n_steps), 8)


def mlp_arena2d_kernel(x_ref,
                       w1_ref, b1_ref,      # body_net Linear(722, 128p)
                       w2_ref, b2_ref,      # body_net Linear(128p, 128p)
                       wh_ref, bh_ref,      # fused policy|value head (128p, 128p)
                       out_ref):
    cdt = w1_ref.dtype                      # bf16 (default) or f32 compute dtype
    x = x_ref[...].astype(cdt)              # cast in VMEM: no extra HBM traffic

    # body_net: Linear -> ReLU -> Linear -> ReLU, f32 accumulation on the MXU.
    h1 = jnp.dot(x, w1_ref[...], preferred_element_type=jnp.float32) + b1_ref[...]
    h1 = jnp.maximum(h1, 0.0).astype(cdt)
    body = jnp.dot(h1, w2_ref[...], preferred_element_type=jnp.float32) + b2_ref[...]
    body = jnp.maximum(body, 0.0).astype(cdt)

    # fused policy+value head: one matmul, one unmasked 128-lane store.
    out = jnp.dot(body, wh_ref[...], preferred_element_type=jnp.float32) + bh_ref[...]
    out_ref[...] = jnp.maximum(out, 0.0)


def _pad_params(params, use_bf16):
    """Lane-dense-pad the output dims, fuse the two heads, optionally cast weights."""
    w1, b1, w2, b2, wp, bp, wv, bv = params
    f32 = jnp.float32
    wdt = jnp.bfloat16 if use_bf16 else f32

    # K stays 722 for w1 (matches the unpadded x stream); only N is padded.
    w1p = jnp.zeros((IN_DIM, HID_PAD), f32).at[:, :HIDDEN].set(w1).astype(wdt)
    b1p = jnp.zeros((1, HID_PAD), f32).at[:, :HIDDEN].set(b1)

    w2p = jnp.zeros((HID_PAD, HID_PAD), f32).at[:HIDDEN, :FEATURE_DIM].set(w2).astype(wdt)
    b2p = jnp.zeros((1, HID_PAD), f32).at[:, :FEATURE_DIM].set(b2)

    wh = jnp.concatenate([wp, wv], axis=1)                     # (feature, 64)
    bh = jnp.concatenate([bp, bv], axis=1)                     # (1, 64)
    whp = jnp.zeros((HID_PAD, HEAD_PAD), f32).at[:FEATURE_DIM, :PI_DIM + VF_DIM].set(wh).astype(wdt)
    bhp = jnp.zeros((1, HEAD_PAD), f32).at[:, :PI_DIM + VF_DIM].set(bh)

    return w1p, b1p, w2p, b2p, whp, bhp


def mlp_arena2d(features, params, *, tb=None, use_bf16=True, vmem_limit_bytes=None):
    """features: (B, 722) float32. Returns (latent_pi (B,32), latent_vf (B,32))."""
    B, in_dim = features.shape
    assert in_dim == IN_DIM, f"expected feature dim {IN_DIM}, got {in_dim}"
    if features.dtype != jnp.float32:
        features = features.astype(jnp.float32)

    w1p, b1p, w2p, b2p, whp, bhp = _pad_params(params, use_bf16)

    tb_default, vmem_default = _tpu_defaults()
    if tb is None:
        tb = tb_default
    if vmem_limit_bytes is None:
        vmem_limit_bytes = vmem_default

    tb_eff = _choose_tb(B, tb)
    grid = (_cdiv(B, tb_eff),)              # last block may be partial (masked)

    weight_bytes = sum(int(a.size) * a.dtype.itemsize
                       for a in (w1p, b1p, w2p, b2p, whp, bhp))
    cost = pl.CostEstimate(
        flops=2 * B * (IN_DIM * HID_PAD + HID_PAD * HID_PAD + HID_PAD * HEAD_PAD),
        transcendentals=0,
        bytes_accessed=B * (IN_DIM + HEAD_PAD) * 4 + weight_bytes,
    )

    cparams = {"dimension_semantics": ("parallel",)}
    if vmem_limit_bytes is not None:
        cparams["vmem_limit_bytes"] = int(vmem_limit_bytes)

    const2d = lambda i: (0, 0)              # weights/biases stay VMEM-resident

    out = pl.pallas_call(
        mlp_arena2d_kernel,
        out_shape=jax.ShapeDtypeStruct((B, HEAD_PAD), jnp.float32),
        grid=grid,
        in_specs=[
            pl.BlockSpec((tb_eff, IN_DIM), lambda i: (i, 0)),   # x: streamed, no pad copy
            pl.BlockSpec((IN_DIM, HID_PAD), const2d),           # w1 (722, 128)
            pl.BlockSpec((1, HID_PAD), const2d),                # b1
            pl.BlockSpec((HID_PAD, HID_PAD), const2d),          # w2
            pl.BlockSpec((1, HID_PAD), const2d),                # b2
            pl.BlockSpec((HID_PAD, HEAD_PAD), const2d),         # fused head W
            pl.BlockSpec((1, HEAD_PAD), const2d),               # fused head b
        ],
        out_specs=pl.BlockSpec((tb_eff, HEAD_PAD), lambda i: (i, 0)),
        compiler_params=pltpu.CompilerParams(**cparams),
        cost_estimate=cost,
    )(features, w1p, b1p, w2p, b2p, whp, bhp)

    pi = out[:, :PI_DIM]
    vf = out[:, PI_DIM:PI_DIM + VF_DIM]
    return pi, vf


def init_params(key, feature_dim=FEATURE_DIM):
    """Deterministic synthetic parameters (weights stored as (in, out))."""
    ks = jax.random.split(key, 8)

    def lin(kw, kb, fan_in, fan_out):
        # uniform(-1/sqrt(fan_in), 1/sqrt(fan_in)), like nn.Linear default init
        bound = 1.0 / jnp.sqrt(jnp.float32(fan_in))
        w = jax.random.uniform(kw, (fan_in, fan_out), jnp.float32, -bound, bound)
        b = jax.random.uniform(kb, (1, fan_out), jnp.float32, -bound, bound)
        return w, b

    w1, b1 = lin(ks[0], ks[1], IN_DIM, HIDDEN)
    w2, b2 = lin(ks[2], ks[3], HIDDEN, feature_dim)
    wp, bp = lin(ks[4], ks[5], feature_dim, PI_DIM)
    wv, bv = lin(ks[6], ks[7], feature_dim, VF_DIM)
    return (w1, b1, w2, b2, wp, bp, wv, bv)


def reference(features, params):
    w1, b1, w2, b2, wp, bp, wv, bv = params
    h1 = jnp.maximum(features @ w1 + b1, 0.0)
    body = jnp.maximum(h1 @ w2 + b2, 0.0)
    pi = jnp.maximum(body @ wp + bp, 0.0)
    vf = jnp.maximum(body @ wv + bv, 0.0)
    return pi, vf


if __name__ == "__main__":
    key = jax.random.PRNGKey(0)
    k_param, k_x = jax.random.split(key)
    params = init_params(k_param)

    # Small demo batch (not a multiple of 8 on purpose — handled without padding).
    batch = 4
    features = jax.random.normal(k_x, (batch, IN_DIM), jnp.float32)
    pi_ref, vf_ref = reference(features, params)

    # Exact f32 path — must match the reference to 1e-5.
    pi32, vf32 = mlp_arena2d(features, params, use_bf16=False)
    jax.block_until_ready((pi32, vf32))
    assert pi32.shape == (batch, PI_DIM) and vf32.shape == (batch, VF_DIM)
    assert jnp.allclose(pi32, pi_ref, atol=1e-5, rtol=1e-5)
    assert jnp.allclose(vf32, vf_ref, atol=1e-5, rtol=1e-5)

    # Default fast path (bf16 MXU operands, f32 accumulation) — relaxed tolerance.
    pi, vf = mlp_arena2d(features, params)
    jax.block_until_ready((pi, vf))
    assert jnp.allclose(pi, pi_ref, atol=2e-2, rtol=2e-2)
    assert jnp.allclose(vf, vf_ref, atol=2e-2, rtol=2e-2)

    # Multi-tile path: batch not a multiple of the tile or of 8; forces a
    # partial final block and exercises the grid/pipelining + masked writeback.
    big_batch = 1030
    feats_big = jax.random.normal(jax.random.PRNGKey(1), (big_batch, IN_DIM), jnp.float32)
    pi_b, vf_b = mlp_arena2d(feats_big, params, tb=512)
    jax.block_until_ready((pi_b, vf_b))
    pi_br, vf_br = reference(feats_big, params)
    assert pi_b.shape == (big_batch, PI_DIM) and vf_b.shape == (big_batch, VF_DIM)
    assert jnp.allclose(pi_b, pi_br, atol=2e-2, rtol=2e-2)
    assert jnp.allclose(vf_b, vf_br, atol=2e-2, rtol=2e-2)

    print("KERNEL_OK")
</pallas_src>

<mosaic_0001>
module attributes {stable_mosaic.version = 11 : i64} {
  func.func @mlp_arena2d_kernel(%arg0: i32, %arg1: memref<4x722xf32, #tpu.memory_space<vmem>>, %arg2: memref<722x128xf32, #tpu.memory_space<vmem>>, %arg3: memref<1x128xf32, #tpu.memory_space<vmem>>, %arg4: memref<128x128xf32, #tpu.memory_space<vmem>>, %arg5: memref<1x128xf32, #tpu.memory_space<vmem>>, %arg6: memref<128x128xf32, #tpu.memory_space<vmem>>, %arg7: memref<1x128xf32, #tpu.memory_space<vmem>>, %arg8: memref<4x128xf32, #tpu.memory_space<vmem>>) attributes {dimension_semantics = [#tpu.dimension_semantics<parallel>], iteration_bounds = array<i64: 1>, scalar_prefetch = 0 : i64, scratch_operands = 0 : i64, tpu.core_type = #tpu.core_type<tc>, window_params = [{transform_indices = @transform_0, window_bounds = array<i64: 4, 722>}, {pipeline_mode = #tpu.pipeline_mode<synchronous>, transform_indices = @transform_1, window_bounds = array<i64: 722, 128>}, {pipeline_mode = #tpu.pipeline_mode<synchronous>, transform_indices = @transform_2, window_bounds = array<i64: 1, 128>}, {pipeline_mode = #tpu.pipeline_mode<synchronous>, transform_indices = @transform_3, window_bounds = array<i64: 128, 128>}, {pipeline_mode = #tpu.pipeline_mode<synchronous>, transform_indices = @transform_4, window_bounds = array<i64: 1, 128>}, {pipeline_mode = #tpu.pipeline_mode<synchronous>, transform_indices = @transform_5, window_bounds = array<i64: 128, 128>}, {pipeline_mode = #tpu.pipeline_mode<synchronous>, transform_indices = @transform_6, window_bounds = array<i64: 1, 128>}, {transform_indices = @transform_7, window_bounds = array<i64: 4, 128>}]} {
    %c0 = arith.constant 0 : index
    %c0_0 = arith.constant 0 : index
    %0 = vector.load %arg1[%c0, %c0_0] : memref<4x722xf32, #tpu.memory_space<vmem>>, vector<4x722xf32>
    %c0_1 = arith.constant 0 : index
    %c0_2 = arith.constant 0 : index
    %1 = vector.load %arg2[%c0_1, %c0_2] : memref<722x128xf32, #tpu.memory_space<vmem>>, vector<722x128xf32>
    %cst = arith.constant dense<0.000000e+00> : vector<4x128xf32>
    %2 = tpu.matmul %0, %1, %cst {dimension_numbers = #tpu.dot_dimension_numbers<[1], [0], [0], [1], [0, 0, 1, 1], [], []>} : vector<4x722xf32>, vector<722x128xf32>, vector<4x128xf32> -> vector<4x128xf32>
    %c0_3 = arith.constant 0 : index
    %c0_4 = arith.constant 0 : index
    %3 = vector.load %arg3[%c0_3, %c0_4] : memref<1x128xf32, #tpu.memory_space<vmem>>, vector<1x128xf32>
    %4 = vector.broadcast %3 : vector<1x128xf32> to vector<4x128xf32>
    %5 = arith.addf %2, %4 : vector<4x128xf32>
    %cst_5 = arith.constant 0.000000e+00 : f32
    %6 = vector.broadcast %cst_5 : f32 to vector<4x128xf32>
    %7 = arith.maximumf %5, %6 : vector<4x128xf32>
    %c0_6 = arith.constant 0 : index
    %c0_7 = arith.constant 0 : index
    %8 = vector.load %arg4[%c0_6, %c0_7] : memref<128x128xf32, #tpu.memory_space<vmem>>, vector<128x128xf32>
    %cst_8 = arith.constant dense<0.000000e+00> : vector<4x128xf32>
    %9 = tpu.matmul %7, %8, %cst_8 {dimension_numbers = #tpu.dot_dimension_numbers<[1], [0], [0], [1], [0, 0, 1, 1], [], []>} : vector<4x128xf32>, vector<128x128xf32>, vector<4x128xf32> -> vector<4x128xf32>
    %c0_9 = arith.constant 0 : index
    %c0_10 = arith.constant 0 : index
    %10 = vector.load %arg5[%c0_9, %c0_10] : memref<1x128xf32, #tpu.memory_space<vmem>>, vector<1x128xf32>
    %11 = vector.broadcast %10 : vector<1x128xf32> to vector<4x128xf32>
    %12 = arith.addf %9, %11 : vector<4x128xf32>
    %cst_11 = arith.constant 0.000000e+00 : f32
    %13 = vector.broadcast %cst_11 : f32 to vector<4x128xf32>
    %14 = arith.maximumf %12, %13 : vector<4x128xf32>
    %c0_12 = arith.constant 0 : index
    %c0_13 = arith.constant 0 : index
    %15 = vector.load %arg6[%c0_12, %c0_13] : memref<128x128xf32, #tpu.memory_space<vmem>>, vector<128x128xf32>
    %cst_14 = arith.constant dense<0.000000e+00> : vector<4x128xf32>
    %16 = tpu.matmul %14, %15, %cst_14 {dimension_numbers = #tpu.dot_dimension_numbers<[1], [0], [0], [1], [0, 0, 1, 1], [], []>} : vector<4x128xf32>, vector<128x128xf32>, vector<4x128xf32> -> vector<4x128xf32>
    %c0_15 = arith.constant 0 : index
    %c0_16 = arith.constant 0 : index
    %17 = vector.load %arg7[%c0_15, %c0_16] : memref<1x128xf32, #tpu.memory_space<vmem>>, vector<1x128xf32>
    %18 = vector.broadcast %17 : vector<1x128xf32> to vector<4x128xf32>
    %19 = arith.addf %16, %18 : vector<4x128xf32>
    %cst_17 = arith.constant 0.000000e+00 : f32
    %20 = vector.broadcast %cst_17 : f32 to vector<4x128xf32>
    %21 = arith.maximumf %19, %20 : vector<4x128xf32>
    %c0_18 = arith.constant 0 : index
    %c0_19 = arith.constant 0 : index
    %22 = vector.load %arg8[%c0_18, %c0_19] : memref<4x128xf32, #tpu.memory_space<vmem>>, vector<4x128xf32>
    tpu.vector_store %arg8[%c0_18, %c0_19], %21 {strides = array<i32>} : memref<4x128xf32, #tpu.memory_space<vmem>>, vector<4x128xf32>,
    return
  }
  func.func @transform_0(%arg0: i32) -> (i32, i32) {
    %c0_i32 = arith.constant 0 : i32
    %c0_i32_0 = arith.constant 0 : i32
    return %arg0, %c0_i32 : i32, i32
  }
  func.func @transform_1(%arg0: i32) -> (i32, i32) {
    %c0_i32 = arith.constant 0 : i32
    %c0_i32_0 = arith.constant 0 : i32
    %c0_i32_1 = arith.constant 0 : i32
    return %c0_i32, %c0_i32_0 : i32, i32
  }
  func.func @transform_2(%arg0: i32) -> (i32, i32) {
    %c0_i32 = arith.constant 0 : i32
    %c0_i32_0 = arith.constant 0 : i32
    %c0_i32_1 = arith.constant 0 : i32
    return %c0_i32, %c0_i32_0 : i32, i32
  }
  func.func @transform_3(%arg0: i32) -> (i32, i32) {
    %c0_i32 = arith.constant 0 : i32
    %c0_i32_0 = arith.constant 0 : i32
    %c0_i32_1 = arith.constant 0 : i32
    return %c0_i32, %c0_i32_0 : i32, i32
  }
  func.func @transform_4(%arg0: i32) -> (i32, i32) {
    %c0_i32 = arith.constant 0 : i32
    %c0_i32_0 = arith.constant 0 : i32
    %c0_i32_1 = arith.constant 0 : i32
    return %c0_i32, %c0_i32_0 : i32, i32
  }
  func.func @transform_5(%arg0: i32) -> (i32, i32) {
    %c0_i32 = arith.constant 0 : i32
    %c0_i32_0 = arith.constant 0 : i32
    %c0_i32_1 = arith.constant 0 : i32
    return %c0_i32, %c0_i32_0 : i32, i32
  }
  func.func @transform_6(%arg0: i32) -> (i32, i32) {
    %c0_i32 = arith.constant 0 : i32
    %c0_i32_0 = arith.constant 0 : i32
    %c0_i32_1 = arith.constant 0 : i32
    return %c0_i32, %c0_i32_0 : i32, i32
  }
  func.func @transform_7(%arg0: i32) -> (i32, i32) {
    %c0_i32 = arith.constant 0 : i32
    %c0_i32_0 = arith.constant 0 : i32
    return %arg0, %c0_i32 : i32, i32
  }
}

</mosaic_0001>

<llo_original>
// kernel: tpu_custom_call.1
$region0: #{tpu_custom_call.1}
  #allocation0 [shape = 'u32[]', space=smem, size = 0x4, offset = 0x4, fixed_abs, tag = 'smem constant byte address 0x4 - core index']
  #allocation1 [shape = 'u32[144,128]{1,0:T(1,128)}', space=vmem, size = 0x12000, scoped, tag = 'internal scratch']
  %s0 = inlined_call_operand.hbm [shape: f32[4,722], index: 0, kind: input, shape index: {}]
  %s1 = inlined_call_operand.hbm [shape: f32[722,128], index: 1, kind: input, shape index: {}]
  %s2 = inlined_call_operand.vmem [shape: f32[1,128], index: 2, kind: input, shape index: {}]
  %s3 = inlined_call_operand.hbm [shape: f32[128,128], index: 3, kind: input, shape index: {}]
  %s4 = inlined_call_operand.vmem [shape: f32[1,128], index: 4, kind: input, shape index: {}]
  %s5 = inlined_call_operand.hbm [shape: f32[128,128], index: 5, kind: input, shape index: {}]
  %s6 = inlined_call_operand.vmem [shape: f32[1,128], index: 6, kind: input, shape index: {}]
  %s7 = inlined_call_operand.hbm [shape: f32[4,128], index: 7, kind: output, shape index: {}]
  %s8 = sld [smem:[#allocation0]]
  $region54: #{tpu_custom_call.1} parent=0
    _
  %s10 = ssub.s32 1, %s8
  %s11 = scalar_select 0, %s10, %s8
  $region1: #{tpu_custom_call.1} parent=0
    #allocation2 [shape = 'u8[12288]{0}', space=vmem, size = 0x3000, scoped, tag = 'input window, operand 0, single buffered']
    #allocation3 [shape = 's32[1]{0}', space=sflag, size = 0x4, scoped, tag = 'scoped memory for tpu_custom_call.1']
    #allocation4 [shape = 's32[1]{0}', space=sflag, size = 0x4, scoped, tag = 'scoped memory for tpu_custom_call.1']
    #allocation5 [shape = 'u8[372736]{0}', space=vmem, size = 0x5b000, scoped, tag = 'input window, operand 1, single buffered']
    #allocation6 [shape = 's32[1]{0}', space=sflag, size = 0x4, scoped, tag = 'scoped memory for tpu_custom_call.1']
    #allocation7 [shape = 'u8[65536]{0}', space=vmem, size = 0x10000, scoped, tag = 'input window, operand 3, single buffered']
    #allocation8 [shape = 'u8[65536]{0}', space=vmem, size = 0x10000, scoped, tag = 'input window, operand 5, single buffered']
    #allocation9 [shape = 's32[1]{0}', space=sflag, size = 0x4, scoped, tag = 'scoped memory for tpu_custom_call.1']
    #allocation10 [shape = 'u8[2048]{0}', space=vmem, size = 0x800, scoped, tag = 'output window, operand 0, single buffered']
    %12 = vsyncpa [#allocation3], 0
    %13 = vsyncpa [#allocation6], 0
    %14 = vsyncpa [#allocation9], 0
    %15 = vsyncpa [#allocation4], 0
    // Predicated region
    $region2: #{tpu_custom_call.1} parent=1 // pred_check
      _
    $region3: #{tpu_custom_call.1} parent=1 // pred_check_branch
      %17 = sbr.rel (0) target = $region5
    $region4: #{tpu_custom_call.1} parent=1 // pred_region
      %s19 = ssub.s32 384, 384
      %20 = vsyncadd [#allocation3], %s19
      %s22 = sshll.u32 [#allocation2], 4
      %s23 = int_to_ptr.vmem [resolvable:$true] %s22
      %25 = dma.hbm_to_vmem [thread:$0]  %s0, 384, %s23, [#allocation3]
    $region5: #{tpu_custom_call.1} parent=1 // pred_fallthru
      _
    // Predicated region
    $region6: #{tpu_custom_call.1} parent=1 // pred_check
      _
    $region7: #{tpu_custom_call.1} parent=1 // pred_check_branch
      %27 = sbr.rel (0) target = $region9
    $region8: #{tpu_custom_call.1} parent=1 // pred_region
      %s29 = ssub.s32 11648, 11648
      %30 = vsyncadd [#allocation6], %s29
      %s31 = sshll.u32 [#allocation5], 4
      %s32 = int_to_ptr.vmem [resolvable:$true] %s31
      %37 = dma.hbm_to_vmem [thread:$0]  %s1, 11648, %s32, [#allocation6], 128, 128, 8
    $region9: #{tpu_custom_call.1} parent=1 // pred_fallthru
      _
    // Predicated region
    $region10: #{tpu_custom_call.1} parent=1 // pred_check
      _
    $region11: #{tpu_custom_call.1} parent=1 // pred_check_branch
      %39 = sbr.rel (0) target = $region13
    $region12: #{tpu_custom_call.1} parent=1 // pred_region
      _
    $region13: #{tpu_custom_call.1} parent=1 // pred_fallthru
      _
    // Predicated region
    $region14: #{tpu_custom_call.1} parent=1 // pred_check
      _
    $region15: #{tpu_custom_call.1} parent=1 // pred_check_branch
      %41 = sbr.rel (0) target = $region17
    $region16: #{tpu_custom_call.1} parent=1 // pred_region
      %s43 = ssub.s32 2048, 2048
      %44 = vsyncadd [#allocation6], %s43
      %s45 = sshll.u32 [#allocation7], 4
      %s46 = int_to_ptr.vmem [resolvable:$true] %s45
      %51 = dma.hbm_to_vmem [thread:$0]  %s3, 2048, %s46, [#allocation6], 128, 128, 8
    $region17: #{tpu_custom_call.1} parent=1 // pred_fallthru
      _
    // Predicated region
    $region18: #{tpu_custom_call.1} parent=1 // pred_check
      _
    $region19: #{tpu_custom_call.1} parent=1 // pred_check_branch
      %53 = sbr.rel (0) target = $region21
    $region20: #{tpu_custom_call.1} parent=1 // pred_region
      _
    $region21: #{tpu_custom_call.1} parent=1 // pred_fallthru
      _
    // Predicated region
    $region22: #{tpu_custom_call.1} parent=1 // pred_check
      _
    $region23: #{tpu_custom_call.1} parent=1 // pred_check_branch
      %55 = sbr.rel (0) target = $region25
    $region24: #{tpu_custom_call.1} parent=1 // pred_region
      %s57 = ssub.s32 2048, 2048
      %58 = vsyncadd [#allocation9], %s57
      %s59 = sshll.u32 [#allocation8], 4
      %s60 = int_to_ptr.vmem [resolvable:$true] %s59
      %65 = dma.hbm_to_vmem [thread:$0]  %s5, 2048, %s60, [#allocation9], 128, 128, 8
    $region25: #{tpu_custom_call.1} parent=1 // pred_fallthru
      _
    // Predicated region
    $region26: #{tpu_custom_call.1} parent=1 // pred_check
      _
    $region27: #{tpu_custom_call.1} parent=1 // pred_check_branch
      %67 = sbr.rel (0) target = $region29
    $region28: #{tpu_custom_call.1} parent=1 // pred_region
      _
    $region29: #{tpu_custom_call.1} parent=1 // pred_fallthru
      _
    // Predicated region
    $region30: #{tpu_custom_call.1} parent=1 // pred_check
      _
    $region31: #{tpu_custom_call.1} parent=1 // pred_check_branch
      %69 = sbr.rel (0) target = $region33
    $region32: #{tpu_custom_call.1} parent=1 // pred_region
      %70 = dma.done [#allocation3], 384
    $region33: #{tpu_custom_call.1} parent=1 // pred_fallthru
      _
    // Predicated region
    $region34: #{tpu_custom_call.1} parent=1 // pred_check
      _
    $region35: #{tpu_custom_call.1} parent=1 // pred_check_branch
      %72 = sbr.rel (0) target = $region37
    $region36: #{tpu_custom_call.1} parent=1 // pred_region
      %73 = dma.done [#allocation6], 11648
    $region37: #{tpu_custom_call.1} parent=1 // pred_fallthru
      _
    // Predicated region
    $region38: #{tpu_custom_call.1} parent=1 // pred_check
      _
    $region39: #{tpu_custom_call.1} parent=1 // pred_check_branch
      %75 = sbr.rel (0) target = $region41
    $region40: #{tpu_custom_call.1} parent=1 // pred_region
      %76 = dma.done [#allocation6], 2048
    $region41: #{tpu_custom_call.1} parent=1 // pred_fallthru
      _
    // Predicated region
    $region42: #{tpu_custom_call.1} parent=1 // pred_check
      _
    $region43: #{tpu_custom_call.1} parent=1 // pred_check_branch
      %78 = sbr.rel (0) target = $region45
    $region44: #{tpu_custom_call.1} parent=1 // pred_region
      %79 = dma.done [#allocation9], 2048
    $region45: #{tpu_custom_call.1} parent=1 // pred_fallthru
      _
    %v80 = vld [vmem:[#allocation2] sm:$0xff]
    %v81 = vld [vmem:[#allocation2 + $0x8] sm:$0xff]
    %v82 = vld [vmem:[#allocation2 + $0x10] sm:$0xff]
    %v83 = vld [vmem:[#allocation5] sm:$0xff]
    %v84 = vld [vmem:[#allocation5 + $0x8] sm:$0xff]
    %v85 = vld [vmem:[#allocation5 + $0x10] sm:$0xff]
    %v86 = vld [vmem:[#allocation5 + $0x18] sm:$0xff]
    %v87 = vld [vmem:[#allocation5 + $0x20] sm:$0xff]
    %v88 = vld [vmem:[#allocation5 + $0x28] sm:$0xff]
    %v89 = vld [vmem:[#allocation5 + $0x30] sm:$0xff]
    %v90 = vld [vmem:[#allocation5 + $0x38] sm:$0xff]
    %v91 = vld [vmem:[#allocation5 + $0x40] sm:$0xff]
    %v92 = vld [vmem:[#allocation5 + $0x48] sm:$0xff]
    %v93 = vld [vmem:[#allocation5 + $0x50] sm:$0xff]
    %v94 = vld [vmem:[#allocation5 + $0x58] sm:$0xff]
    %v95 = vld [vmem:[#allocation5 + $0x60] sm:$0xff]
    %v96 = vld [vmem:[#allocation5 + $0x68] sm:$0xff]
    %v97 = vld [vmem:[#allocation5 + $0x70] sm:$0xff]
    %v98 = vld [vmem:[#allocation5 + $0x78] sm:$0xff]
    %v99 = vld [vmem:[#allocation5 + $0x80] sm:$0xff]
    %v100 = vld [vmem:[#allocation5 + $0x88] sm:$0xff]
    %v101 = vld [vmem:[#allocation5 + $0x90] sm:$0xff]
    %v102 = vld [vmem:[#allocation5 + $0x98] sm:$0xff]
    %v103 = vld [vmem:[#allocation5 + $0xa0] sm:$0xff]
    %v104 = vld [vmem:[#allocation5 + $0xa8] sm:$0xff]
    %v105 = vld [vmem:[#allocation5 + $0xb0] sm:$0xff]
    %v106 = vld [vmem:[#allocation5 + $0xb8] sm:$0xff]
    %v107 = vld [vmem:[#allocation5 + $0xc0] sm:$0xff]
    %v108 = vld [vmem:[#allocation5 + $0xc8] sm:$0xff]
    %v109 = vld [vmem:[#allocation5 + $0xd0] sm:$0xff]
    %v110 = vld [vmem:[#allocation5 + $0xd8] sm:$0xff]
    %v111 = vld [vmem:[#allocation5 + $0xe0] sm:$0xff]
    %v112 = vld [vmem:[#allocation5 + $0xe8] sm:$0xff]
    %v113 = vld [vmem:[#allocation5 + $0xf0] sm:$0xff]
    %v114 = vld [vmem:[#allocation5 + $0xf8] sm:$0xff]
    %v115 = vld [vmem:[#allocation5 + $0x100] sm:$0xff]
    %v116 = vld [vmem:[#allocation5 + $0x108] sm:$0xff]
    %v117 = vld [vmem:[#allocation5 + $0x110] sm:$0xff]
    %v118 = vld [vmem:[#allocation5 + $0x118] sm:$0xff]
    %v119 = vld [vmem:[#allocation5 + $0x120] sm:$0xff]
    %v120 = vld [vmem:[#allocation5 + $0x128] sm:$0xff]
    %v121 = vld [vmem:[#allocation5 + $0x130] sm:$0xff]
    %v122 = vld [vmem:[#allocation5 + $0x138] sm:$0xff]
    %v123 = vld [vmem:[#allocation5 + $0x140] sm:$0xff]
    %v124 = vld [vmem:[#allocation5 + $0x148] sm:$0xff]
    %v125 = vld [vmem:[#allocation5 + $0x150] sm:$0xff]
    %v126 = vld [vmem:[#allocation5 + $0x158] sm:$0xff]
    %v127 = vld [vmem:[#allocation5 + $0x160] sm:$0xff]
    %v128 = vld [vmem:[#allocation5 + $0x168] sm:$0xff]
    %v129 = vld [vmem:[#allocation5 + $0x170] sm:$0xff]
    %v130 = vld [vmem:[#allocation5 + $0x178] sm:$0xff]
    %v131 = vld [vmem:[#allocation5 + $0x180] sm:$0xff]
    %v132 = vld [vmem:[#allocation5 + $0x188] sm:$0xff]
    %v133 = vld [vmem:[#allocation5 + $0x190] sm:$0xff]
    %v134 = vld [vmem:[#allocation5 + $0x198] sm:$0xff]
    %v135 = vld [vmem:[#allocation5 + $0x1a0] sm:$0xff]
    %v136 = vld [vmem:[#allocation5 + $0x1a8] sm:$0xff]
    %v137 = vld [vmem:[#allocation5 + $0x1b0] sm:$0xff]
    %v138 = vld [vmem:[#allocation5 + $0x1b8] sm:$0xff]
    %v139 = vld [vmem:[#allocation5 + $0x1c0] sm:$0xff]
    %v140 = vld [vmem:[#allocation5 + $0x1c8] sm:$0xff]
    %v141 = vld [vmem:[#allocation5 + $0x1d0] sm:$0xff]
    %v142 = vld [vmem:[#allocation5 + $0x1d8] sm:$0xff]
    %v143 = vld [vmem:[#allocation5 + $0x1e0] sm:$0xff]
    %v144 = vld [vmem:[#allocation5 + $0x1e8] sm:$0xff]
    %v145 = vld [vmem:[#allocation5 + $0x1f0] sm:$0xff]
    %v146 = vld [vmem:[#allocation5 + $0x1f8] sm:$0xff]
    %v147 = vld [vmem:[#allocation5 + $0x200] sm:$0xff]
    %v148 = vld [vmem:[#allocation5 + $0x208] sm:$0xff]
    %v149 = vld [vmem:[#allocation5 + $0x210] sm:$0xff]
    %v150 = vld [vmem:[#allocation5 + $0x218] sm:$0xff]
    %v151 = vld [vmem:[#allocation5 + $0x220] sm:$0xff]
    %v152 = vld [vmem:[#allocation5 + $0x228] sm:$0xff]
    %v153 = vld [vmem:[#allocation5 + $0x230] sm:$0xff]
    %v154 = vld [vmem:[#allocation5 + $0x238] sm:$0xff]
    %v155 = vld [vmem:[#allocation5 + $0x240] sm:$0xff]
    %v156 = vld [vmem:[#allocation5 + $0x248] sm:$0xff]
    %v157 = vld [vmem:[#allocation5 + $0x250] sm:$0xff]
    %v158 = vld [vmem:[#allocation5 + $0x258] sm:$0xff]
    %v159 = vld [vmem:[#allocation5 + $0x260] sm:$0xff]
    %v160 = vld [vmem:[#allocation5 + $0x268] sm:$0xff]
    %v161 = vld [vmem:[#allocation5 + $0x270] sm:$0xff]
    %v162 = vld [vmem:[#allocation5 + $0x278] sm:$0xff]
    %v163 = vld [vmem:[#allocation5 + $0x280] sm:$0xff]
    %v164 = vld [vmem:[#allocation5 + $0x288] sm:$0xff]
    %v165 = vld [vmem:[#allocation5 + $0x290] sm:$0xff]
    %v166 = vld [vmem:[#allocation5 + $0x298] sm:$0xff]
    %v167 = vld [vmem:[#allocation5 + $0x2a0] sm:$0xff]
    %v168 = vld [vmem:[#allocation5 + $0x2a8] sm:$0xff]
    %v169 = vld [vmem:[#allocation5 + $0x2b0] sm:$0xff]
    %v170 = vld [vmem:[#allocation5 + $0x2b8] sm:$0xff]
    %v171 = vld [vmem:[#allocation5 + $0x2c0] sm:$0xff]
    %v172 = vld [vmem:[#allocation5 + $0x2c8] sm:$0xff]
    %v173 = vld [vmem:[#allocation5 + $0x2d0] sm:$0x3]
    %v174 = vld [vmem:[%s2] sm:$0x1]
    %v176 = vlaneseq
    %v177 = vshrl.u32 %v176, 7
    %v178 = vsub.s32 0, %v177
    %v179 = vrot.slane %v174, %v178
    %v184 = vcombine.high %v80, %v80
    %v185 = vcombine.high %v81, %v81
    %v186 = vcombine.high %v82, %v82
    %vm189 = vcmask 670720
    %v190 = vsel %vm189, %v186, 0
    %vm192 = vcmask 1041408
    %v194 = vsel %vm192, %v173, 0
    %196 = vmatprep.subr.mxu0 0.0
    %197 = vmatpush1.msra.mxu0 %v83
    %198 = vmatprep.subr.mxu0 0.0
    %199 = vmatpush1.msra.mxu0 %v84
    %200 = vmatprep.subr.mxu0 0.0
    %201 = vmatpush1.msra.mxu0 %v85
    %202 = vmatprep.subr.mxu0 0.0
    %203 = vmatpush1.msra.mxu0 %v86
    %204 = vmatprep.subr.mxu0 0.0
    %205 = vmatpush1.msra.mxu0 %v87
    %206 = vmatprep.subr.mxu0 0.0
    %207 = vmatpush1.msra.mxu0 %v88
    %208 = vmatprep.subr.mxu0 0.0
    %209 = vmatpush1.msra.mxu0 %v89
    %210 = vmatprep.subr.mxu0 0.0
    %211 = vmatpush1.msra.mxu0 %v90
    %212 = vmatprep.subr.mxu0 0.0
    %213 = vmatpush1.msra.mxu0 %v91
    %214 = vmatprep.subr.mxu0 0.0
    %215 = vmatpush1.msra.mxu0 %v92
    %216 = vmatprep.subr.mxu0 0.0
    %217 = vmatpush1.msra.mxu0 %v93
    %218 = vmatprep.subr.mxu0 0.0
    %219 = vmatpush1.msra.mxu0 %v94
    %220 = vmatprep.subr.mxu0 0.0
    %221 = vmatpush1.msra.mxu0 %v95
    %222 = vmatprep.subr.mxu0 0.0
    %223 = vmatpush1.msra.mxu0 %v96
    %224 = vmatprep.subr.mxu0 0.0
    %225 = vmatpush1.msra.mxu0 %v97
    %226 = vmatprep.subr.mxu0 0.0
    %227 = vmatpush1.msra.mxu0 %v98
    %228 = vmatprep.subr.mxu0 0.0
    %229 = vmatpush1.msra.mxu0 %v99
    %230 = vmatprep.subr.mxu0 0.0
    %231 = vmatpush1.msra.mxu0 %v100
    %232 = vmatprep.subr.mxu0 0.0
    %233 = vmatpush1.msra.mxu0 %v101
    %234 = vmatprep.subr.mxu0 0.0
    %235 = vmatpush1.msra.mxu0 %v102
    %236 = vmatprep.subr.mxu0 0.0
    %237 = vmatpush1.msra.mxu0 %v103
    %238 = vmatprep.subr.mxu0 0.0
    %239 = vmatpush1.msra.mxu0 %v104
    %240 = vmatprep.subr.mxu0 0.0
    %241 = vmatpush1.msra.mxu0 %v105
    %242 = vmatprep.subr.mxu0 0.0
    %243 = vmatpush1.msra.mxu0 %v106
    %244 = vmatprep.subr.mxu0 0.0
    %245 = vmatpush1.msra.mxu0 %v107
    %246 = vmatprep.subr.mxu0 0.0
    %247 = vmatpush1.msra.mxu0 %v108
    %248 = vmatprep.subr.mxu0 0.0
    %249 = vmatpush1.msra.mxu0 %v109
    %250 = vmatprep.subr.mxu0 0.0
    %251 = vmatpush1.msra.mxu0 %v110
    %252 = vmatprep.subr.mxu0 0.0
    %253 = vmatpush1.msra.mxu0 %v111
    %254 = vmatprep.subr.mxu0 0.0
    %255 = vmatpush1.msra.mxu0 %v112
    %256 = vmatprep.subr.mxu0 0.0
    %257 = vmatpush1.msra.mxu0 %v113
    %258 = vmatprep.subr.mxu0 0.0
    %259 = vmatpush1.msra.mxu0 %v114
    %260 = vmatprep.mubr.f32.mxu0 %v184
    %261 = vmatmul.mubr.f32.gmra.mrb[0].mxu0 %v80
    %v262 = vpop.f32.mrb[0].mxu0
    %v263 = vadd.f32 %v179, %v262
    %v264 = vpop.f32.mrb[0].mxu0
    %265 = vdwg.mxu0
    %266 = vmatprep.subr.mxu0 0.0
    %267 = vmatpush1.msra.mxu0 %v115
    %268 = vmatprep.subr.mxu0 0.0
    %269 = vmatpush1.msra.mxu0 %v116
    %270 = vmatprep.subr.mxu0 0.0
    %271 = vmatpush1.msra.mxu0 %v117
    %272 = vmatprep.subr.mxu0 0.0
    %273 = vmatpush1.msra.mxu0 %v118
    %274 = vmatprep.subr.mxu0 0.0
    %275 = vmatpush1.msra.mxu0 %v119
    %276 = vmatprep.subr.mxu0 0.0
    %277 = vmatpush1.msra.mxu0 %v120
    %278 = vmatprep.subr.mxu0 0.0
    %279 = vmatpush1.msra.mxu0 %v121
    %280 = vmatprep.subr.mxu0 0.0
    %281 = vmatpush1.msra.mxu0 %v122
    %282 = vmatprep.subr.mxu0 0.0
    %283 = vmatpush1.msra.mxu0 %v123
    %284 = vmatprep.subr.mxu0 0.0
    %285 = vmatpush1.msra.mxu0 %v124
    %286 = vmatprep.subr.mxu0 0.0
    %287 = vmatpush1.msra.mxu0 %v125
    %288 = vmatprep.subr.mxu0 0.0
    %289 = vmatpush1.msra.mxu0 %v126
    %290 = vmatprep.subr.mxu0 0.0
    %291 = vmatpush1.msra.mxu0 %v127
    %292 = vmatprep.subr.mxu0 0.0
    %293 = vmatpush1.msra.mxu0 %v128
    %294 = vmatprep.subr.mxu0 0.0
    %295 = vmatpush1.msra.mxu0 %v129
    %296 = vmatprep.subr.mxu0 0.0
    %297 = vmatpush1.msra.mxu0 %v130
    %298 = vmatprep.subr.mxu0 0.0
    %299 = vmatpush1.msra.mxu0 %v131
    %300 = vmatprep.subr.mxu0 0.0
    %301 = vmatpush1.msra.mxu0 %v132
    %302 = vmatprep.subr.mxu0 0.0
    %303 = vmatpush1.msra.mxu0 %v133
    %304 = vmatprep.subr.mxu0 0.0
    %305 = vmatpush1.msra.mxu0 %v134
    %306 = vmatprep.subr.mxu0 0.0
    %307 = vmatpush1.msra.mxu0 %v135
    %308 = vmatprep.subr.mxu0 0.0
    %309 = vmatpush1.msra.mxu0 %v136
    %310 = vmatprep.subr.mxu0 0.0
    %311 = vmatpush1.msra.mxu0 %v137
    %312 = vmatprep.subr.mxu0 0.0
    %313 = vmatpush1.msra.mxu0 %v138
    %314 = vmatprep.subr.mxu0 0.0
    %315 = vmatpush1.msra.mxu0 %v139
    %316 = vmatprep.subr.mxu0 0.0
    %317 = vmatpush1.msra.mxu0 %v140
    %318 = vmatprep.subr.mxu0 0.0
    %319 = vmatpush1.msra.mxu0 %v141
    %320 = vmatprep.subr.mxu0 0.0
    %321 = vmatpush1.msra.mxu0 %v142
    %322 = vmatprep.subr.mxu0 0.0
    %323 = vmatpush1.msra.mxu0 %v143
    %324 = vmatprep.subr.mxu0 0.0
    %325 = vmatpush1.msra.mxu0 %v144
    %326 = vmatprep.subr.mxu0 0.0
    %327 = vmatpush1.msra.mxu0 %v145
    %328 = vmatprep.subr.mxu0 0.0
    %329 = vmatpush1.msra.mxu0 %v146
    %330 = vmatprep.mubr.f32.mxu0 %v185
    %331 = vmatmul.mubr.f32.gmra.mrb[0].mxu0 %v81
    %v332 = vpop.f32.mrb[0].mxu0
    %v333 = vadd.f32 %v263, %v332
    %v334 = vpop.f32.mrb[0].mxu0
    %335 = vdwg.mxu0
    %336 = vmatprep.subr.mxu0 0.0
    %337 = vmatpush1.msra.mxu0 %v147
    %338 = vmatprep.subr.mxu0 0.0
    %339 = vmatpush1.msra.mxu0 %v148
    %340 = vmatprep.subr.mxu0 0.0
    %341 = vmatpush1.msra.mxu0 %v149
    %342 = vmatprep.subr.mxu0 0.0
    %343 = vmatpush1.msra.mxu0 %v150
    %344 = vmatprep.subr.mxu0 0.0
    %345 = vmatpush1.msra.mxu0 %v151
    %346 = vmatprep.subr.mxu0 0.0
    %347 = vmatpush1.msra.mxu0 %v152
    %348 = vmatprep.subr.mxu0 0.0
    %349 = vmatpush1.msra.mxu0 %v153
    %350 = vmatprep.subr.mxu0 0.0
    %351 = vmatpush1.msra.mxu0 %v154
    %352 = vmatprep.subr.mxu0 0.0
    %353 = vmatpush1.msra.mxu0 %v155
    %354 = vmatprep.subr.mxu0 0.0
    %355 = vmatpush1.msra.mxu0 %v156
    %356 = vmatprep.subr.mxu0 0.0
    %357 = vmatpush1.msra.mxu0 %v157
    %358 = vmatprep.subr.mxu0 0.0
    %359 = vmatpush1.msra.mxu0 %v158
    %360 = vmatprep.subr.mxu0 0.0
    %361 = vmatpush1.msra.mxu0 %v159
    %362 = vmatprep.subr.mxu0 0.0
    %363 = vmatpush1.msra.mxu0 %v160
    %364 = vmatprep.subr.mxu0 0.0
    %365 = vmatpush1.msra.mxu0 %v161
    %366 = vmatprep.subr.mxu0 0.0
    %367 = vmatpush1.msra.mxu0 %v162
    %368 = vmatprep.subr.mxu0 0.0
    %369 = vmatpush1.msra.mxu0 %v163
    %370 = vmatprep.subr.mxu0 0.0
    %371 = vmatpush1.msra.mxu0 %v164
    %372 = vmatprep.subr.mxu0 0.0
    %373 = vmatpush1.msra.mxu0 %v165
    %374 = vmatprep.subr.mxu0 0.0
    %375 = vmatpush1.msra.mxu0 %v166
    %376 = vmatprep.subr.mxu0 0.0
    %377 = vmatpush1.msra.mxu0 %v167
    %378 = vmatprep.subr.mxu0 0.0
    %379 = vmatpush1.msra.mxu0 %v168
    %380 = vmatprep.subr.mxu0 0.0
    %381 = vmatpush1.msra.mxu0 %v169
    %382 = vmatprep.subr.mxu0 0.0
    %383 = vmatpush1.msra.mxu0 %v170
    %384 = vmatprep.subr.mxu0 0.0
    %385 = vmatpush1.msra.mxu0 %v171
    %386 = vmatprep.subr.mxu0 0.0
    %387 = vmatpush1.msra.mxu0 %v172
    %388 = vmatprep.subr.mxu0 0.0
    %389 = vmatpush1.msra.mxu0 %v194
    %390 = vmatprep.subr.mxu0 0.0
    %391 = vmatpush1.msra.mxu0 0.0
    %392 = vmatprep.subr.mxu0 0.0
    %393 = vmatpush1.msra.mxu0 0.0
    %394 = vmatprep.subr.mxu0 0.0
    %395 = vmatpush1.msra.mxu0 0.0
    %396 = vmatprep.subr.mxu0 0.0
    %397 = vmatpush1.msra.mxu0 0.0
    %398 = vmatprep.subr.mxu0 0.0
    %399 = vmatpush1.msra.mxu0 0.0
    %400 = vmatprep.mubr.f32.mxu0 %v190
    %401 = vmatmul.mubr.f32.gmra.mrb[0].mxu0 %v82
    %v402 = vpop.f32.mrb[0].mxu0
    %v403 = vadd.f32 %v333, %v402
    %v404 = vpop.f32.mrb[0].mxu0
    %405 = vdwg.mxu0
    %v406 = vmax.f32 %v403, 0.0
    %v407 = vld [vmem:[#allocation7] sm:$0xff]
    %v408 = vld [vmem:[#allocation7 + $0x8] sm:$0xff]
    %v409 = vld [vmem:[#allocation7 + $0x10] sm:$0xff]
    %v410 = vld [vmem:[#allocation7 + $0x18] sm:$0xff]
    %v411 = vld [vmem:[#allocation7 + $0x20] sm:$0xff]
    %v412 = vld [vmem:[#allocation7 + $0x28] sm:$0xff]
    %v413 = vld [vmem:[#allocation7 + $0x30] sm:$0xff]
    %v414 = vld [vmem:[#allocation7 + $0x38] sm:$0xff]
    %v415 = vld [vmem:[#allocation7 + $0x40] sm:$0xff]
    %v416 = vld [vmem:[#allocation7 + $0x48] sm:$0xff]
    %v417 = vld [vmem:[#allocation7 + $0x50] sm:$0xff]
    %v418 = vld [vmem:[#allocation7 + $0x58] sm:$0xff]
    %v419 = vld [vmem:[#allocation7 + $0x60] sm:$0xff]
    %v420 = vld [vmem:[#allocation7 + $0x68] sm:$0xff]
    %v421 = vld [vmem:[#allocation7 + $0x70] sm:$0xff]
    %v422 = vld [vmem:[#allocation7 + $0x78] sm:$0xff]
    %v423 = vld [vmem:[%s4] sm:$0x1]
    %v425 = vlaneseq
    %v426 = vshrl.u32 %v425, 7
    %v427 = vsub.s32 0, %v426
    %v428 = vrot.slane %v423, %v427
    %430 = vmatprep.subr.mxu0 0.0
    %431 = vmatpush1.msra.mxu0 %v407
    %432 = vmatprep.subr.mxu0 0.0
    %433 = vmatpush1.msra.mxu0 %v408
    %434 = vmatprep.subr.mxu0 0.0
    %435 = vmatpush1.msra.mxu0 %v409
    %436 = vmatprep.subr.mxu0 0.0
    %437 = vmatpush1.msra.mxu0 %v410
    %438 = vmatprep.subr.mxu0 0.0
    %439 = vmatpush1.msra.mxu0 %v411
    %440 = vmatprep.subr.mxu0 0.0
    %441 = vmatpush1.msra.mxu0 %v412
    %442 = vmatprep.subr.mxu0 0.0
    %443 = vmatpush1.msra.mxu0 %v413
    %444 = vmatprep.subr.mxu0 0.0
    %445 = vmatpush1.msra.mxu0 %v414
    %446 = vmatprep.subr.mxu0 0.0
    %447 = vmatpush1.msra.mxu0 %v415
    %448 = vmatprep.subr.mxu0 0.0
    %449 = vmatpush1.msra.mxu0 %v416
    %450 = vmatprep.subr.mxu0 0.0
    %451 = vmatpush1.msra.mxu0 %v417
    %452 = vmatprep.subr.mxu0 0.0
    %453 = vmatpush1.msra.mxu0 %v418
    %454 = vmatprep.subr.mxu0 0.0
    %455 = vmatpush1.msra.mxu0 %v419
    %456 = vmatprep.subr.mxu0 0.0
    %457 = vmatpush1.msra.mxu0 %v420
    %458 = vmatprep.subr.mxu0 0.0
    %459 = vmatpush1.msra.mxu0 %v421
    %460 = vmatprep.subr.mxu0 0.0
    %461 = vmatpush1.msra.mxu0 %v422
    %462 = vmatprep.subr.mxu0 0.0
    %463 = vmatpush1.msra.mxu0 0.0
    %464 = vmatprep.subr.mxu0 0.0
    %465 = vmatpush1.msra.mxu0 0.0
    %466 = vmatprep.subr.mxu0 0.0
    %467 = vmatpush1.msra.mxu0 0.0
    %468 = vmatprep.subr.mxu0 0.0
    %469 = vmatpush1.msra.mxu0 0.0
    %470 = vmatprep.subr.mxu0 0.0
    %471 = vmatpush1.msra.mxu0 0.0
    %472 = vmatprep.subr.mxu0 0.0
    %473 = vmatpush1.msra.mxu0 0.0
    %474 = vmatprep.subr.mxu0 0.0
    %475 = vmatpush1.msra.mxu0 0.0
    %476 = vmatprep.subr.mxu0 0.0
    %477 = vmatpush1.msra.mxu0 0.0
    %478 = vmatprep.subr.mxu0 0.0
    %479 = vmatpush1.msra.mxu0 0.0
    %480 = vmatprep.subr.mxu0 0.0
    %481 = vmatpush1.msra.mxu0 0.0
    %482 = vmatprep.subr.mxu0 0.0
    %483 = vmatpush1.msra.mxu0 0.0
    %484 = vmatprep.subr.mxu0 0.0
    %485 = vmatpush1.msra.mxu0 0.0
    %486 = vmatprep.subr.mxu0 0.0
    %487 = vmatpush1.msra.mxu0 0.0
    %488 = vmatprep.subr.mxu0 0.0
    %489 = vmatpush1.msra.mxu0 0.0
    %490 = vmatprep.subr.mxu0 0.0
    %491 = vmatpush1.msra.mxu0 0.0
    %492 = vmatprep.subr.mxu0 0.0
    %493 = vmatpush1.msra.mxu0 0.0
    %494 = vmatprep.mubr.f32.mxu0 0.0
    %495 = vmatmul.mubr.f32.gmra.mrb[0].mxu0 %v406
    %v496 = vpop.f32.mrb[0].mxu0
    %v497 = vadd.f32 %v428, %v496
    %v498 = vpop.f32.mrb[0].mxu0
    %499 = vdwg.mxu0
    %v500 = vmax.f32 %v497, 0.0
    %v501 = vld [vmem:[#allocation8] sm:$0xff]
    %v502 = vld [vmem:[#allocation8 + $0x8] sm:$0xff]
    %v503 = vld [vmem:[#allocation8 + $0x10] sm:$0xff]
    %v504 = vld [vmem:[#allocation8 + $0x18] sm:$0xff]
    %v505 = vld [vmem:[#allocation8 + $0x20] sm:$0xff]
    %v506 = vld [vmem:[#allocation8 + $0x28] sm:$0xff]
    %v507 = vld [vmem:[#allocation8 + $0x30] sm:$0xff]
    %v508 = vld [vmem:[#allocation8 + $0x38] sm:$0xff]
    %v509 = vld [vmem:[#allocation8 + $0x40] sm:$0xff]
    %v510 = vld [vmem:[#allocation8 + $0x48] sm:$0xff]
    %v511 = vld [vmem:[#allocation8 + $0x50] sm:$0xff]
    %v512 = vld [vmem:[#allocation8 + $0x58] sm:$0xff]
    %v513 = vld [vmem:[#allocation8 + $0x60] sm:$0xff]
    %v514 = vld [vmem:[#allocation8 + $0x68] sm:$0xff]
    %v515 = vld [vmem:[#allocation8 + $0x70] sm:$0xff]
    %v516 = vld [vmem:[#allocation8 + $0x78] sm:$0xff]
    %v517 = vld [vmem:[%s6] sm:$0x1]
    %v519 = vlaneseq
    %v520 = vshrl.u32 %v519, 7
    %v521 = vsub.s32 0, %v520
    %v522 = vrot.slane %v517, %v521
    %524 = vmatprep.subr.mxu0 0.0
    %525 = vmatpush1.msra.mxu0 %v501
    %526 = vmatprep.subr.mxu0 0.0
    %527 = vmatpush1.msra.mxu0 %v502
    %528 = vmatprep.subr.mxu0 0.0
    %529 = vmatpush1.msra.mxu0 %v503
    %530 = vmatprep.subr.mxu0 0.0
    %531 = vmatpush1.msra.mxu0 %v504
    %532 = vmatprep.subr.mxu0 0.0
    %533 = vmatpush1.msra.mxu0 %v505
    %534 = vmatprep.subr.mxu0 0.0
    %535 = vmatpush1.msra.mxu0 %v506
    %536 = vmatprep.subr.mxu0 0.0
    %537 = vmatpush1.msra.mxu0 %v507
    %538 = vmatprep.subr.mxu0 0.0
    %539 = vmatpush1.msra.mxu0 %v508
    %540 = vmatprep.subr.mxu0 0.0
    %541 = vmatpush1.msra.mxu0 %v509
    %542 = vmatprep.subr.mxu0 0.0
    %543 = vmatpush1.msra.mxu0 %v510
    %544 = vmatprep.subr.mxu0 0.0
    %545 = vmatpush1.msra.mxu0 %v511
    %546 = vmatprep.subr.mxu0 0.0
    %547 = vmatpush1.msra.mxu0 %v512
    %548 = vmatprep.subr.mxu0 0.0
    %549 = vmatpush1.msra.mxu0 %v513
    %550 = vmatprep.subr.mxu0 0.0
    %551 = vmatpush1.msra.mxu0 %v514
    %552 = vmatprep.subr.mxu0 0.0
    %553 = vmatpush1.msra.mxu0 %v515
    %554 = vmatprep.subr.mxu0 0.0
    %555 = vmatpush1.msra.mxu0 %v516
    %556 = vmatprep.subr.mxu0 0.0
    %557 = vmatpush1.msra.mxu0 0.0
    %558 = vmatprep.subr.mxu0 0.0
    %559 = vmatpush1.msra.mxu0 0.0
    %560 = vmatprep.subr.mxu0 0.0
    %561 = vmatpush1.msra.mxu0 0.0
    %562 = vmatprep.subr.mxu0 0.0
    %563 = vmatpush1.msra.mxu0 0.0
    %564 = vmatprep.subr.mxu0 0.0
    %565 = vmatpush1.msra.mxu0 0.0
    %566 = vmatprep.subr.mxu0 0.0
    %567 = vmatpush1.msra.mxu0 0.0
    %568 = vmatprep.subr.mxu0 0.0
    %569 = vmatpush1.msra.mxu0 0.0
    %570 = vmatprep.subr.mxu0 0.0
    %571 = vmatpush1.msra.mxu0 0.0
    %572 = vmatprep.subr.mxu0 0.0
    %573 = vmatpush1.msra.mxu0 0.0
    %574 = vmatprep.subr.mxu0 0.0
    %575 = vmatpush1.msra.mxu0 0.0
    %576 = vmatprep.subr.mxu0 0.0
    %577 = vmatpush1.msra.mxu0 0.0
    %578 = vmatprep.subr.mxu0 0.0
    %579 = vmatpush1.msra.mxu0 0.0
    %580 = vmatprep.subr.mxu0 0.0
    %581 = vmatpush1.msra.mxu0 0.0
    %582 = vmatprep.subr.mxu0 0.0
    %583 = vmatpush1.msra.mxu0 0.0
    %584 = vmatprep.subr.mxu0 0.0
    %585 = vmatpush1.msra.mxu0 0.0
    %586 = vmatprep.subr.mxu0 0.0
    %587 = vmatpush1.msra.mxu0 0.0
    %588 = vmatprep.mubr.f32.mxu0 0.0
    %589 = vmatmul.mubr.f32.gmra.mrb[0].mxu0 %v500
    %v590 = vpop.f32.mrb[0].mxu0
    %v591 = vadd.f32 %v522, %v590
    %v592 = vpop.f32.mrb[0].mxu0
    %593 = vdwg.mxu0
    %v594 = vmax.f32 %v591, 0.0
    %595 = vst [vmem:[#allocation10] sm:$0xf] %v594
    // Predicated region
    $region46: #{tpu_custom_call.1} parent=1 // pred_check
      _
    $region47: #{tpu_custom_call.1} parent=1 // pred_check_branch
      %597 = sbr.rel (0) target = $region49
    $region48: #{tpu_custom_call.1} parent=1 // pred_region
      %s599 = ssub.s32 64, 64
      %600 = vsyncadd [#allocation4], %s599
      %s602 = sshll.u32 [#allocation10], 4
      %s603 = int_to_ptr.vmem [resolvable:$true] %s602
      %605 = dma.vmem_to_hbm [thread:$0]  %s603, 64, %s7, [#allocation4]
    $region49: #{tpu_custom_call.1} parent=1 // pred_fallthru
      _
    // Predicated region
    $region50: #{tpu_custom_call.1} parent=1 // pred_check
      _
    $region51: #{tpu_custom_call.1} parent=1 // pred_check_branch
      %607 = sbr.rel (0) target = $region53
    $region52: #{tpu_custom_call.1} parent=1 // pred_region
      %608 = dma.done [#allocation4], 64
    $region53: #{tpu_custom_call.1} parent=1 // pred_fallthru
      _
    %609 = vsyncpa [#allocation3], 1
    %610 = vsyncpa [#allocation6], 1
    %611 = vsyncpa [#allocation9], 1
    %612 = vsyncpa [#allocation4], 1

</llo_original>
